<compile_context>
chip_gen: v7x
topology: tpu7x:2x2x1
jax: 0.10.0
libtpu: 0.0.40
codegen_flags: <defaults>
</compile_context>

<pallas_src>
import jax
import jax.numpy as jnp
from jax.experimental import pallas as pl
from jax.experimental.pallas import tpu as pltpu


def _fused_conv_add_relu_kernel(x_ref, x2_ref, s_ref, o_ref):
    """x_ref/x2_ref: (N, Cin, H, W) f32 in VMEM (whole batch, no grid).
    s_ref: (2*Cin*W, Cout*Wout) packed selection*weight matrix.
    o_ref: (N, Cout, Hout=H+2, Wout) NCHW output."""
    n_batch, cin, h, w = x_ref.shape
    _, cout, hout, wout = o_ref.shape

    # lhs[n*H + h, src*Cin*W + ci*W + w] = x_src[n, ci, h, w]
    # Lane-concatenate the channel slabs of both inputs, fold batch onto
    # sublanes -> a single MXU contraction covers src, ci and the kw taps.
    rows = []
    for n in range(n_batch):
        slabs = [x_ref[n, ci] for ci in range(cin)]
        slabs += [x2_ref[n, ci] for ci in range(cin)]
        rows.append(jnp.concatenate(slabs, axis=-1))               # (H, 2*Cin*W)
    lhs = jnp.concatenate(rows, axis=0) if n_batch > 1 else rows[0]  # (N*H, 2*Cin*W)

    # One dot: conv1(x) + conv2(x2) for every (n, cout, h, wout), f32 accumulate.
    acc = jnp.dot(lhs, s_ref[...], preferred_element_type=jnp.float32)
    y = jnp.maximum(acc, 0.0)                                       # fused ReLU

    # (1,1) height padding of a bias-free conv followed by ReLU == zero rows.
    # Build the padded tile in registers and store each (n, cout) slab once,
    # aligned at sublane 0 (no full-block zero-init, no offset-1 partial store).
    zero_row = jnp.zeros((1, wout), o_ref.dtype)
    for n in range(n_batch):
        for co in range(cout):
            blk = y[n * h:(n + 1) * h, co * wout:(co + 1) * wout]   # (H, Wout)
            o_ref[n, co] = jnp.concatenate(
                [zero_row, blk.astype(o_ref.dtype), zero_row], axis=0)


def pack_conv_weights(w1_oihw, w2_oihw, W):
    """Fold both Conv2d(Cin,Cout,(1,2),stride=(1,2),pad=(1,1)) weights into one
    (2*Cin*W, Cout*Wout) matrix S such that, with
        lhs[h, src*Cin*W + ci*W + w] = x_src[ci, h, w],
        (lhs @ S)[h, co*Wout + wo] = (conv1(x) + conv2(x2))[co, h + 1, wo].
    The stride-2 window selection, both kw taps and the width zero-padding are
    encoded as scaled one-hot columns.  Call ONCE at weight-load time."""
    Cout, Cin = w1_oihw.shape[:2]
    Wout = W // 2 + 1
    w_idx = jnp.arange(W)[:, None]          # unpadded input column
    wo_idx = jnp.arange(Wout)[None, :]      # output column
    left = (w_idx == 2 * wo_idx - 1).astype(jnp.float32)    # kw = 0 tap (pad-aware)
    right = (w_idx == 2 * wo_idx).astype(jnp.float32)       # kw = 1 tap

    def per_source(w_oihw):                 # -> (Cout, Cin, W, Wout)
        return (w_oihw[:, :, 0, 0][..., None, None] * left
                + w_oihw[:, :, 0, 1][..., None, None] * right)

    S = jnp.stack([per_source(w1_oihw), per_source(w2_oihw)], axis=0)
    # (src, Cout, Cin, W, Wout) -> (src, Cin, W, Cout, Wout) -> (2*Cin*W, Cout*Wout)
    return jnp.transpose(S, (0, 2, 3, 1, 4)).reshape(2 * Cin * W, Cout * Wout)


def simple_net_forward(x, x2, s_packed):
    """relu(conv1(x) + conv2(x2)); x, x2 NCHW float32; s_packed from
    pack_conv_weights.  Returns NCHW float32."""
    N, Cin, H, W = x.shape
    Wout = W // 2 + 1            # kw = 2, stride 2, pad 1 (odd W handled too)
    Hout = H + 2                 # kh = 1, stride 1, pad 1
    Cout = s_packed.shape[1] // Wout

    return pl.pallas_call(
        _fused_conv_add_relu_kernel,
        out_shape=jax.ShapeDtypeStruct((N, Cout, Hout, Wout), jnp.float32),
        # No grid: single invocation, whole arrays resident in VMEM.
        in_specs=[pl.BlockSpec(memory_space=pltpu.MemorySpace.VMEM)] * 3,
        out_specs=pl.BlockSpec(memory_space=pltpu.MemorySpace.VMEM),
    )(x, x2, s_packed)


def _reference_forward(x, x2, w1_oihw, w2_oihw):
    dn = jax.lax.conv_dimension_numbers(x.shape, w1_oihw.shape,
                                        ("NCHW", "OIHW", "NCHW"))
    y1 = jax.lax.conv_general_dilated(
        x, w1_oihw, window_strides=(1, 2), padding=((1, 1), (1, 1)),
        dimension_numbers=dn)
    y2 = jax.lax.conv_general_dilated(
        x2, w2_oihw, window_strides=(1, 2), padding=((1, 1), (1, 1)),
        dimension_numbers=dn)
    return jnp.maximum(y1 + y2, 0.0)


if __name__ == "__main__":
    key = jax.random.PRNGKey(0)
    k_x, k_x2, k_w1, k_w2, k_x3, k_x4 = jax.random.split(key, 6)

    # The module fixes Cin = Cout = 2.
    N, C, H, W = 2, 2, 16, 16
    x = jax.random.normal(k_x, (N, C, H, W), dtype=jnp.float32)
    x2 = jax.random.normal(k_x2, (N, C, H, W), dtype=jnp.float32)

    bound = 1.0 / (C * 1 * 2) ** 0.5     # PyTorch default uniform init bound
    w1 = jax.random.uniform(k_w1, (2, 2, 1, 2), minval=-bound, maxval=bound,
                            dtype=jnp.float32)
    w2 = jax.random.uniform(k_w2, (2, 2, 1, 2), minval=-bound, maxval=bound,
                            dtype=jnp.float32)

    fwd = jax.jit(simple_net_forward)

    # Weight packing happens once, at "weight load" time (not per forward call).
    S_even = pack_conv_weights(w1, w2, W)
    out = jax.block_until_ready(fwd(x, x2, S_even))
    ref = _reference_forward(x, x2, w1, w2)
    assert out.shape == ref.shape == (N, 2, H + 2, W // 2 + 1)
    assert jnp.allclose(out, ref, atol=1e-5, rtol=1e-5), "mismatch (even W)"

    # Odd input width also works (last window's right tap falls on the zero pad).
    W2 = 15
    x3 = jax.random.normal(k_x3, (N, C, H, W2), dtype=jnp.float32)
    x4 = jax.random.normal(k_x4, (N, C, H, W2), dtype=jnp.float32)
    S_odd = pack_conv_weights(w1, w2, W2)
    out2 = jax.block_until_ready(fwd(x3, x4, S_odd))
    ref2 = _reference_forward(x3, x4, w1, w2)
    assert out2.shape == ref2.shape == (N, 2, H + 2, W2 // 2 + 1)
    assert jnp.allclose(out2, ref2, atol=1e-5, rtol=1e-5), "mismatch (odd W)"

    print("KERNEL_OK")
</pallas_src>

<mosaic_0001>
module attributes {stable_mosaic.version = 11 : i64} {
  func.func @_fused_conv_add_relu_kernel(%arg0: memref<2x2x16x16xf32, #tpu.memory_space<vmem>>, %arg1: memref<2x2x16x16xf32, #tpu.memory_space<vmem>>, %arg2: memref<64x18xf32, #tpu.memory_space<vmem>>, %arg3: memref<2x2x18x9xf32, #tpu.memory_space<vmem>>) attributes {dimension_semantics = [], scalar_prefetch = 0 : i64, scratch_operands = 0 : i64, tpu.core_type = #tpu.core_type<tc>} {
    %c0 = arith.constant 0 : index
    %c0_0 = arith.constant 0 : index
    %c0_1 = arith.constant 0 : index
    %c0_2 = arith.constant 0 : index
    %0 = vector.load %arg0[%c0, %c0_0, %c0_1, %c0_2] : memref<2x2x16x16xf32, #tpu.memory_space<vmem>>, vector<1x1x16x16xf32>
    %1 = vector.shape_cast %0 : vector<1x1x16x16xf32> to vector<16x16xf32>
    %c0_3 = arith.constant 0 : index
    %c1 = arith.constant 1 : index
    %c0_4 = arith.constant 0 : index
    %c0_5 = arith.constant 0 : index
    %2 = vector.load %arg0[%c0_3, %c1, %c0_4, %c0_5] : memref<2x2x16x16xf32, #tpu.memory_space<vmem>>, vector<1x1x16x16xf32>
    %3 = vector.shape_cast %2 : vector<1x1x16x16xf32> to vector<16x16xf32>
    %c0_6 = arith.constant 0 : index
    %c0_7 = arith.constant 0 : index
    %c0_8 = arith.constant 0 : index
    %c0_9 = arith.constant 0 : index
    %4 = vector.load %arg1[%c0_6, %c0_7, %c0_8, %c0_9] : memref<2x2x16x16xf32, #tpu.memory_space<vmem>>, vector<1x1x16x16xf32>
    %5 = vector.shape_cast %4 : vector<1x1x16x16xf32> to vector<16x16xf32>
    %c0_10 = arith.constant 0 : index
    %c1_11 = arith.constant 1 : index
    %c0_12 = arith.constant 0 : index
    %c0_13 = arith.constant 0 : index
    %6 = vector.load %arg1[%c0_10, %c1_11, %c0_12, %c0_13] : memref<2x2x16x16xf32, #tpu.memory_space<vmem>>, vector<1x1x16x16xf32>
    %7 = vector.shape_cast %6 : vector<1x1x16x16xf32> to vector<16x16xf32>
    %8 = tpu.concatenate %1, %3, %5, %7 in 1 : vector<16x16xf32>, vector<16x16xf32>, vector<16x16xf32>, vector<16x16xf32> -> vector<16x64xf32>
    %c1_14 = arith.constant 1 : index
    %c0_15 = arith.constant 0 : index
    %c0_16 = arith.constant 0 : index
    %c0_17 = arith.constant 0 : index
    %9 = vector.load %arg0[%c1_14, %c0_15, %c0_16, %c0_17] : memref<2x2x16x16xf32, #tpu.memory_space<vmem>>, vector<1x1x16x16xf32>
    %10 = vector.shape_cast %9 : vector<1x1x16x16xf32> to vector<16x16xf32>
    %c1_18 = arith.constant 1 : index
    %c1_19 = arith.constant 1 : index
    %c0_20 = arith.constant 0 : index
    %c0_21 = arith.constant 0 : index
    %11 = vector.load %arg0[%c1_18, %c1_19, %c0_20, %c0_21] : memref<2x2x16x16xf32, #tpu.memory_space<vmem>>, vector<1x1x16x16xf32>
    %12 = vector.shape_cast %11 : vector<1x1x16x16xf32> to vector<16x16xf32>
    %c1_22 = arith.constant 1 : index
    %c0_23 = arith.constant 0 : index
    %c0_24 = arith.constant 0 : index
    %c0_25 = arith.constant 0 : index
    %13 = vector.load %arg1[%c1_22, %c0_23, %c0_24, %c0_25] : memref<2x2x16x16xf32, #tpu.memory_space<vmem>>, vector<1x1x16x16xf32>
    %14 = vector.shape_cast %13 : vector<1x1x16x16xf32> to vector<16x16xf32>
    %c1_26 = arith.constant 1 : index
    %c1_27 = arith.constant 1 : index
    %c0_28 = arith.constant 0 : index
    %c0_29 = arith.constant 0 : index
    %15 = vector.load %arg1[%c1_26, %c1_27, %c0_28, %c0_29] : memref<2x2x16x16xf32, #tpu.memory_space<vmem>>, vector<1x1x16x16xf32>
    %16 = vector.shape_cast %15 : vector<1x1x16x16xf32> to vector<16x16xf32>
    %17 = tpu.concatenate %10, %12, %14, %16 in 1 : vector<16x16xf32>, vector<16x16xf32>, vector<16x16xf32>, vector<16x16xf32> -> vector<16x64xf32>
    %18 = tpu.concatenate %8, %17 in 0 : vector<16x64xf32>, vector<16x64xf32> -> vector<32x64xf32>
    %c0_30 = arith.constant 0 : index
    %c0_31 = arith.constant 0 : index
    %19 = vector.load %arg2[%c0_30, %c0_31] : memref<64x18xf32, #tpu.memory_space<vmem>>, vector<64x18xf32>
    %cst = arith.constant dense<0.000000e+00> : vector<32x18xf32>
    %20 = tpu.matmul %18, %19, %cst {dimension_numbers = #tpu.dot_dimension_numbers<[1], [0], [0], [1], [0, 0, 1, 1], [], []>} : vector<32x64xf32>, vector<64x18xf32>, vector<32x18xf32> -> vector<32x18xf32>
    %cst_32 = arith.constant 0.000000e+00 : f32
    %21 = vector.broadcast %cst_32 : f32 to vector<32x18xf32>
    %22 = arith.maximumf %20, %21 : vector<32x18xf32>
    %cst_33 = arith.constant 0.000000e+00 : f32
    %23 = vector.broadcast %cst_33 : f32 to vector<1x9xf32>
    %24 = vector.extract_strided_slice %22 {offsets = [0, 0], sizes = [16, 9], strides = [1, 1]} : vector<32x18xf32> to vector<16x9xf32>
    %25 = tpu.concatenate %23, %24, %23 in 0 : vector<1x9xf32>, vector<16x9xf32>, vector<1x9xf32> -> vector<18x9xf32>
    %c0_34 = arith.constant 0 : index
    %c0_35 = arith.constant 0 : index
    %c0_36 = arith.constant 0 : index
    %c0_37 = arith.constant 0 : index
    %26 = vector.load %arg3[%c0_34, %c0_35, %c0_36, %c0_37] : memref<2x2x18x9xf32, #tpu.memory_space<vmem>>, vector<1x1x18x9xf32>
    %27 = vector.shape_cast %26 : vector<1x1x18x9xf32> to vector<18x9xf32>
    %28 = vector.shape_cast %25 : vector<18x9xf32> to vector<1x1x18x9xf32>
    tpu.vector_store %arg3[%c0_34, %c0_35, %c0_36, %c0_37], %28 {strides = array<i32>} : memref<2x2x18x9xf32, #tpu.memory_space<vmem>>, vector<1x1x18x9xf32>,
    %29 = vector.extract_strided_slice %22 {offsets = [0, 9], sizes = [16, 9], strides = [1, 1]} : vector<32x18xf32> to vector<16x9xf32>
    %30 = tpu.concatenate %23, %29, %23 in 0 : vector<1x9xf32>, vector<16x9xf32>, vector<1x9xf32> -> vector<18x9xf32>
    %c0_38 = arith.constant 0 : index
    %c1_39 = arith.constant 1 : index
    %c0_40 = arith.constant 0 : index
    %c0_41 = arith.constant 0 : index
    %31 = vector.load %arg3[%c0_38, %c1_39, %c0_40, %c0_41] : memref<2x2x18x9xf32, #tpu.memory_space<vmem>>, vector<1x1x18x9xf32>
    %32 = vector.shape_cast %31 : vector<1x1x18x9xf32> to vector<18x9xf32>
    %33 = vector.shape_cast %30 : vector<18x9xf32> to vector<1x1x18x9xf32>
    tpu.vector_store %arg3[%c0_38, %c1_39, %c0_40, %c0_41], %33 {strides = array<i32>} : memref<2x2x18x9xf32, #tpu.memory_space<vmem>>, vector<1x1x18x9xf32>,
    %34 = vector.extract_strided_slice %22 {offsets = [16, 0], sizes = [16, 9], strides = [1, 1]} : vector<32x18xf32> to vector<16x9xf32>
    %35 = tpu.concatenate %23, %34, %23 in 0 : vector<1x9xf32>, vector<16x9xf32>, vector<1x9xf32> -> vector<18x9xf32>
    %c1_42 = arith.constant 1 : index
    %c0_43 = arith.constant 0 : index
    %c0_44 = arith.constant 0 : index
    %c0_45 = arith.constant 0 : index
    %36 = vector.load %arg3[%c1_42, %c0_43, %c0_44, %c0_45] : memref<2x2x18x9xf32, #tpu.memory_space<vmem>>, vector<1x1x18x9xf32>
    %37 = vector.shape_cast %36 : vector<1x1x18x9xf32> to vector<18x9xf32>
    %38 = vector.shape_cast %35 : vector<18x9xf32> to vector<1x1x18x9xf32>
    tpu.vector_store %arg3[%c1_42, %c0_43, %c0_44, %c0_45], %38 {strides = array<i32>} : memref<2x2x18x9xf32, #tpu.memory_space<vmem>>, vector<1x1x18x9xf32>,
    %39 = vector.extract_strided_slice %22 {offsets = [16, 9], sizes = [16, 9], strides = [1, 1]} : vector<32x18xf32> to vector<16x9xf32>
    %40 = tpu.concatenate %23, %39, %23 in 0 : vector<1x9xf32>, vector<16x9xf32>, vector<1x9xf32> -> vector<18x9xf32>
    %c1_46 = arith.constant 1 : index
    %c1_47 = arith.constant 1 : index
    %c0_48 = arith.constant 0 : index
    %c0_49 = arith.constant 0 : index
    %41 = vector.load %arg3[%c1_46, %c1_47, %c0_48, %c0_49] : memref<2x2x18x9xf32, #tpu.memory_space<vmem>>, vector<1x1x18x9xf32>
    %42 = vector.shape_cast %41 : vector<1x1x18x9xf32> to vector<18x9xf32>
    %43 = vector.shape_cast %40 : vector<18x9xf32> to vector<1x1x18x9xf32>
    tpu.vector_store %arg3[%c1_46, %c1_47, %c0_48, %c0_49], %43 {strides = array<i32>} : memref<2x2x18x9xf32, #tpu.memory_space<vmem>>, vector<1x1x18x9xf32>,
    return
  }
}

</mosaic_0001>

<llo_original>
// kernel: simple_net_forward.1
$region0: #{simple_net_forward.1}
  #allocation0 [shape = 'u32[]', space=smem, size = 0x4, offset = 0x4, fixed_abs, tag = 'smem constant byte address 0x4 - core index']
  #allocation1 [shape = 'u32[144,128]{1,0:T(1,128)}', space=vmem, size = 0x12000, scoped, tag = 'internal scratch']
  %s0 = inlined_call_operand.vmem [shape: f32[2,2,16,16], index: 0, kind: input, shape index: {}]
  %s1 = inlined_call_operand.hbm [shape: f32[2,2,16,16], index: 1, kind: input, shape index: {}]
  %s2 = inlined_call_operand.vmem [shape: f32[64,18], index: 2, kind: input, shape index: {}]
  %s3 = inlined_call_operand.vmem [shape: f32[2,2,18,9], index: 3, kind: output, shape index: {}]
  %s4 = sld [smem:[#allocation0]]
  $region26: #{simple_net_forward.1} parent=0
    _
  %s6 = ssub.s32 1, %s4
  %s7 = scalar_select 0, %s6, %s4
  $region1: #{simple_net_forward.1} parent=0
    #allocation2 [shape = 'u8[32768]{0}', space=vmem, size = 0x8000, scoped, tag = 'input window, operand 1, single buffered']
    #allocation3 [shape = 's32[1]{0}', space=sflag, size = 0x4, scoped, tag = 'scoped memory for simple_net_forward.1']
    %8 = vsyncpa [#allocation3], 0
    // Predicated region
    $region2: #{simple_net_forward.1} parent=1 // pred_check
      _
    $region3: #{simple_net_forward.1} parent=1 // pred_check_branch
      %10 = sbr.rel (0) target = $region5
    $region4: #{simple_net_forward.1} parent=1 // pred_region
      _
    $region5: #{simple_net_forward.1} parent=1 // pred_fallthru
      _
    // Predicated region
    $region6: #{simple_net_forward.1} parent=1 // pred_check
      _
    $region7: #{simple_net_forward.1} parent=1 // pred_check_branch
      %12 = sbr.rel (0) target = $region9
    $region8: #{simple_net_forward.1} parent=1 // pred_region
      %s14 = ssub.s32 1024, 1024
      %15 = vsyncadd [#allocation3], %s14
      %s16 = sshll.u32 [#allocation2], 4
      %s17 = int_to_ptr.vmem [resolvable:$true] %s16
      %22 = dma.hbm_to_vmem [thread:$0]  %s1, 1024, %s17, [#allocation3], 128, 128, 8
    $region9: #{simple_net_forward.1} parent=1 // pred_fallthru
      _
    // Predicated region
    $region10: #{simple_net_forward.1} parent=1 // pred_check
      _
    $region11: #{simple_net_forward.1} parent=1 // pred_check_branch
      %24 = sbr.rel (0) target = $region13
    $region12: #{simple_net_forward.1} parent=1 // pred_region
      _
    $region13: #{simple_net_forward.1} parent=1 // pred_fallthru
      _
    // Predicated region
    $region14: #{simple_net_forward.1} parent=1 // pred_check
      _
    $region15: #{simple_net_forward.1} parent=1 // pred_check_branch
      %26 = sbr.rel (0) target = $region17
    $region16: #{simple_net_forward.1} parent=1 // pred_region
      %27 = dma.done [#allocation3], 1024
    $region17: #{simple_net_forward.1} parent=1 // pred_fallthru
      _
    %v28 = vld [vmem:[%s0] sm:$0xff]
    %v29 = vld [vmem:[%s0 + $0x8] sm:$0xff]
    %s30 = scalar_lea.vmem %s0, 16
    %v31 = vld [vmem:[%s30] sm:$0xff]
    %v32 = vld [vmem:[%s30 + $0x8] sm:$0xff]
    %v33 = vld [vmem:[#allocation2] sm:$0xff]
    %v34 = vld [vmem:[#allocation2 + $0x8] sm:$0xff]
    %s35 = scalar_lea.vmem [#allocation2], 16
    %v36 = vld [vmem:[%s35] sm:$0xff]
    %v37 = vld [vmem:[%s35 + $0x8] sm:$0xff]
    %40 = vrot.lane.b32.xlu0 %v31, 16
    %v41 = vpop.permute.xlu0 %40
    %42 = vrot.lane.b32.xlu0 %v32, 16
    %v43 = vpop.permute.xlu0 %42
    %48 = vrot.lane.b32.xlu0 %v33, 32
    %v49 = vpop.permute.xlu0 %48
    %50 = vrot.lane.b32.xlu0 %v34, 32
    %v51 = vpop.permute.xlu0 %50
    %56 = vrot.lane.b32.xlu0 %v36, 48
    %v57 = vpop.permute.xlu0 %56
    %58 = vrot.lane.b32.xlu0 %v37, 48
    %v59 = vpop.permute.xlu0 %58
    %vm62 = vcmask 130048
    %v63 = vsel %vm62, %v28, %v41
    %v64 = vsel %vm62, %v29, %v43
    %vm65 = vcmask 261120
    %v66 = vsel %vm65, %v63, %v49
    %v67 = vsel %vm65, %v64, %v51
    %vm68 = vcmask 392192
    %v69 = vsel %vm68, %v66, %v57
    %v70 = vsel %vm68, %v67, %v59
    %s71 = scalar_lea.vmem %s0, 32
    %v72 = vld [vmem:[%s71] sm:$0xff]
    %v73 = vld [vmem:[%s71 + $0x8] sm:$0xff]
    %s74 = scalar_lea.vmem %s0, 48
    %v75 = vld [vmem:[%s74] sm:$0xff]
    %v76 = vld [vmem:[%s74 + $0x8] sm:$0xff]
    %s77 = scalar_lea.vmem [#allocation2], 32
    %v78 = vld [vmem:[%s77] sm:$0xff]
    %v79 = vld [vmem:[%s77 + $0x8] sm:$0xff]
    %s80 = scalar_lea.vmem [#allocation2], 48
    %v81 = vld [vmem:[%s80] sm:$0xff]
    %v82 = vld [vmem:[%s80 + $0x8] sm:$0xff]
    %85 = vrot.lane.b32.xlu0 %v75, 16
    %v86 = vpop.permute.xlu0 %85
    %87 = vrot.lane.b32.xlu0 %v76, 16
    %v88 = vpop.permute.xlu0 %87
    %93 = vrot.lane.b32.xlu0 %v78, 32
    %v94 = vpop.permute.xlu0 %93
    %95 = vrot.lane.b32.xlu0 %v79, 32
    %v96 = vpop.permute.xlu0 %95
    %101 = vrot.lane.b32.xlu0 %v81, 48
    %v102 = vpop.permute.xlu0 %101
    %103 = vrot.lane.b32.xlu0 %v82, 48
    %v104 = vpop.permute.xlu0 %103
    %v107 = vsel %vm62, %v72, %v86
    %v108 = vsel %vm62, %v73, %v88
    %v109 = vsel %vm65, %v107, %v94
    %v110 = vsel %vm65, %v108, %v96
    %v111 = vsel %vm68, %v109, %v102
    %v112 = vsel %vm68, %v110, %v104
    %v113 = vld [vmem:[%s2] sm:$0xff]
    %v114 = vld [vmem:[%s2 + $0x8] sm:$0xff]
    %v115 = vld [vmem:[%s2 + $0x10] sm:$0xff]
    %v116 = vld [vmem:[%s2 + $0x18] sm:$0xff]
    %v117 = vld [vmem:[%s2 + $0x20] sm:$0xff]
    %v118 = vld [vmem:[%s2 + $0x28] sm:$0xff]
    %v119 = vld [vmem:[%s2 + $0x30] sm:$0xff]
    %v120 = vld [vmem:[%s2 + $0x38] sm:$0xff]
    %vm121 = vcmask 523264
    %v123 = vsel %vm121, %v69, 0
    %v126 = vsel %vm121, %v70, 0
    %v129 = vsel %vm121, %v111, 0
    %v132 = vsel %vm121, %v112, 0
    %134 = vmatprep.subr.mxu0 0.0
    %135 = vmatpush1.msra.mxu0 %v113
    %136 = vmatprep.subr.mxu0 0.0
    %137 = vmatpush1.msra.mxu0 %v114
    %138 = vmatprep.subr.mxu0 0.0
    %139 = vmatpush1.msra.mxu0 %v115
    %140 = vmatprep.subr.mxu0 0.0
    %141 = vmatpush1.msra.mxu0 %v116
    %142 = vmatprep.subr.mxu0 0.0
    %143 = vmatpush1.msra.mxu0 %v117
    %144 = vmatprep.subr.mxu0 0.0
    %145 = vmatpush1.msra.mxu0 %v118
    %146 = vmatprep.subr.mxu0 0.0
    %147 = vmatpush1.msra.mxu0 %v119
    %148 = vmatprep.subr.mxu0 0.0
    %149 = vmatpush1.msra.mxu0 %v120
    %150 = vmatprep.subr.mxu0 0.0
    %151 = vmatpush1.msra.mxu0 0.0
    %152 = vmatprep.subr.mxu0 0.0
    %153 = vmatpush1.msra.mxu0 0.0
    %154 = vmatprep.subr.mxu0 0.0
    %155 = vmatpush1.msra.mxu0 0.0
    %156 = vmatprep.subr.mxu0 0.0
    %157 = vmatpush1.msra.mxu0 0.0
    %158 = vmatprep.subr.mxu0 0.0
    %159 = vmatpush1.msra.mxu0 0.0
    %160 = vmatprep.subr.mxu0 0.0
    %161 = vmatpush1.msra.mxu0 0.0
    %162 = vmatprep.subr.mxu0 0.0
    %163 = vmatpush1.msra.mxu0 0.0
    %164 = vmatprep.subr.mxu0 0.0
    %165 = vmatpush1.msra.mxu0 0.0
    %166 = vmatprep.subr.mxu0 0.0
    %167 = vmatpush1.msra.mxu0 0.0
    %168 = vmatprep.subr.mxu0 0.0
    %169 = vmatpush1.msra.mxu0 0.0
    %170 = vmatprep.subr.mxu0 0.0
    %171 = vmatpush1.msra.mxu0 0.0
    %172 = vmatprep.subr.mxu0 0.0
    %173 = vmatpush1.msra.mxu0 0.0
    %174 = vmatprep.subr.mxu0 0.0
    %175 = vmatpush1.msra.mxu0 0.0
    %176 = vmatprep.subr.mxu0 0.0
    %177 = vmatpush1.msra.mxu0 0.0
    %178 = vmatprep.subr.mxu0 0.0
    %179 = vmatpush1.msra.mxu0 0.0
    %180 = vmatprep.subr.mxu0 0.0
    %181 = vmatpush1.msra.mxu0 0.0
    %182 = vmatprep.subr.mxu0 0.0
    %183 = vmatpush1.msra.mxu0 0.0
    %184 = vmatprep.subr.mxu0 0.0
    %185 = vmatpush1.msra.mxu0 0.0
    %186 = vmatprep.subr.mxu0 0.0
    %187 = vmatpush1.msra.mxu0 0.0
    %188 = vmatprep.subr.mxu0 0.0
    %189 = vmatpush1.msra.mxu0 0.0
    %190 = vmatprep.subr.mxu0 0.0
    %191 = vmatpush1.msra.mxu0 0.0
    %192 = vmatprep.subr.mxu0 0.0
    %193 = vmatpush1.msra.mxu0 0.0
    %194 = vmatprep.subr.mxu0 0.0
    %195 = vmatpush1.msra.mxu0 0.0
    %196 = vmatprep.subr.mxu0 0.0
    %197 = vmatpush1.msra.mxu0 0.0
    %198 = vmatprep.mubr.f32.mxu0 0.0
    %199 = vmatmul.mubr.f32.gmra.mrb[0].mxu0 %v123
    %v200 = vpop.f32.mrb[0].mxu0
    %v201 = vadd.f32 0.0, %v200
    %v202 = vpop.f32.mrb[0].mxu0
    %203 = vmatprep.mubr.f32.mxu0 0.0
    %204 = vmatmul.mubr.f32.gmra.mrb[0].mxu0 %v126
    %v205 = vpop.f32.mrb[0].mxu0
    %v206 = vadd.f32 0.0, %v205
    %v207 = vpop.f32.mrb[0].mxu0
    %208 = vmatprep.mubr.f32.mxu0 0.0
    %209 = vmatmul.mubr.f32.gmra.mrb[0].mxu0 %v129
    %v210 = vpop.f32.mrb[0].mxu0
    %v211 = vadd.f32 0.0, %v210
    %v212 = vpop.f32.mrb[0].mxu0
    %213 = vmatprep.mubr.f32.mxu0 0.0
    %214 = vmatmul.mubr.f32.gmra.mrb[0].mxu0 %v132
    %v215 = vpop.f32.mrb[0].mxu0
    %v216 = vadd.f32 0.0, %v215
    %v217 = vpop.f32.mrb[0].mxu0
    %218 = vdwg.mxu0
    %v219 = vmax.f32 %v201, 0.0
    %v220 = vmax.f32 %v206, 0.0
    %v221 = vmax.f32 %v211, 0.0
    %v222 = vmax.f32 %v216, 0.0
    %vm225 = vcmask 1040384
    %v226 = vrot.slane %v219, 7
    %v227 = vrot.slane %v220, 7
    %v228 = vsel %vm225, %v226, %v227
    %v232 = vsel %vm225, 0.0, %v226
    %v233 = vsel %vm225, %v227, 0.0
    %vm234 = vcmask 72704
    %235 = vst.msk [vmem:[%s3] sm:$0xff] %vm234, %v232
    %236 = vst.msk [vmem:[%s3 + $0x8] sm:$0xff] %vm234, %v228
    %vm237 = vcmask 66560
    %238 = vst.msk [vmem:[%s3 + $0x10] sm:$0x3] %vm237, %v233
    %239 = vrot.lane.b32.xlu0 %v226, 119
    %v240 = vpop.permute.xlu0 %239
    %241 = vrot.lane.b32.xlu0 %v228, 119
    %v242 = vpop.permute.xlu0 %241
    %243 = vrot.lane.b32.xlu0 %v227, 119
    %v244 = vpop.permute.xlu0 %243
    %v248 = vsel %vm225, 0.0, %v240
    %v249 = vsel %vm225, %v244, 0.0
    %s250 = scalar_lea.vmem %s3, 24
    %251 = vst.msk [vmem:[%s250] sm:$0xff] %vm234, %v248
    %252 = vst.msk [vmem:[%s250 + $0x8] sm:$0xff] %vm234, %v242
    %253 = vst.msk [vmem:[%s250 + $0x10] sm:$0x3] %vm237, %v249
    %v256 = vrot.slane %v221, 7
    %v257 = vrot.slane %v222, 7
    %v258 = vsel %vm225, %v256, %v257
    %v262 = vsel %vm225, 0.0, %v256
    %v263 = vsel %vm225, %v257, 0.0
    %s264 = scalar_lea.vmem %s3, 48
    %265 = vst.msk [vmem:[%s264] sm:$0xff] %vm234, %v262
    %266 = vst.msk [vmem:[%s264 + $0x8] sm:$0xff] %vm234, %v258
    %267 = vst.msk [vmem:[%s264 + $0x10] sm:$0x3] %vm237, %v263
    %268 = vrot.lane.b32.xlu0 %v256, 119
    %v269 = vpop.permute.xlu0 %268
    %270 = vrot.lane.b32.xlu0 %v258, 119
    %v271 = vpop.permute.xlu0 %270
    %272 = vrot.lane.b32.xlu0 %v257, 119
    %v273 = vpop.permute.xlu0 %272
    %v277 = vsel %vm225, 0.0, %v269
    %v278 = vsel %vm225, %v273, 0.0
    %s279 = scalar_lea.vmem %s3, 72
    %280 = vst.msk [vmem:[%s279] sm:$0xff] %vm234, %v277
    %281 = vst.msk [vmem:[%s279 + $0x8] sm:$0xff] %vm234, %v271
    %282 = vst.msk [vmem:[%s279 + $0x10] sm:$0x3] %vm237, %v278
    // Predicated region
    $region18: #{simple_net_forward.1} parent=1 // pred_check
      _
    $region19: #{simple_net_forward.1} parent=1 // pred_check_branch
      %284 = sbr.rel (0) target = $region21
    $region20: #{simple_net_forward.1} parent=1 // pred_region
      _
    $region21: #{simple_net_forward.1} parent=1 // pred_fallthru
      _
    // Predicated region
    $region22: #{simple_net_forward.1} parent=1 // pred_check
      _
    $region23: #{simple_net_forward.1} parent=1 // pred_check_branch
      %286 = sbr.rel (0) target = $region25
    $region24: #{simple_net_forward.1} parent=1 // pred_region
      _
    $region25: #{simple_net_forward.1} parent=1 // pred_fallthru
      _
    %287 = vsyncpa [#allocation3], 1

</llo_original>
